<compile_context>
chip_gen: v5e
topology: v5e:2x2
jax: 0.10.0
libtpu: 0.0.40
codegen_flags: <defaults>
</compile_context>

<pallas_src>
import functools

import jax
import jax.numpy as jnp
from jax.experimental import pallas as pl
from jax.experimental.pallas import tpu as pltpu


def _linear_kernel(x_ref, w_ref, o_ref, acc_ref):
    # x_ref: [tm, tk], w_ref: [tk, tn], o_ref: [tm, tn], acc_ref: [tm, tn] f32
    @pl.when(pl.program_id(2) == 0)
    def _init():
        acc_ref[...] = jnp.zeros_like(acc_ref)

    acc_ref[...] += jnp.dot(x_ref[...], w_ref[...],
                            preferred_element_type=jnp.float32)

    @pl.when(pl.program_id(2) == pl.num_programs(2) - 1)
    def _flush():
        o_ref[...] = acc_ref[...].astype(o_ref.dtype)


def _pad_to(a, target_shape):
    pads = [(0, t - s) for s, t in zip(a.shape, target_shape)]
    if all(p == (0, 0) for p in pads):
        return a
    return jnp.pad(a, pads)


@functools.partial(jax.jit, static_argnames=("tm", "tn", "tk"))
def linear_matmul(x, weight, *, tm=128, tn=128, tk=128):
    """y = x @ weight.T ; weight in PyTorch [dim_out, dim_in] layout, no bias."""
    M, K = x.shape
    N = weight.shape[0]
    w_t = weight.T                                   # [K, N]

    Mp = pl.cdiv(M, tm) * tm
    Kp = pl.cdiv(K, tk) * tk
    Np = pl.cdiv(N, tn) * tn

    x_p = _pad_to(x, (Mp, Kp))                       # zero pad: exact result
    w_p = _pad_to(w_t, (Kp, Np))

    out = pl.pallas_call(
        _linear_kernel,
        out_shape=jax.ShapeDtypeStruct((Mp, Np), x.dtype),
        grid_spec=pltpu.PrefetchScalarGridSpec(
            num_scalar_prefetch=0,
            grid=(Mp // tm, Np // tn, Kp // tk),
            in_specs=[
                pl.BlockSpec((tm, tk), lambda i, j, k: (i, k)),
                pl.BlockSpec((tk, tn), lambda i, j, k: (k, j)),
            ],
            out_specs=pl.BlockSpec((tm, tn), lambda i, j, k: (i, j)),
            scratch_shapes=[pltpu.VMEM((tm, tn), jnp.float32)],
        ),
        compiler_params=pltpu.CompilerParams(
            dimension_semantics=("parallel", "parallel", "arbitrary"),
            vmem_limit_bytes=32 * 1024 * 1024,
        ),
    )(x_p, w_p)
    return out[:M, :N]


class GraphBatch:
    """Minimal stand-in for a PyG batch object: only carries node features .x."""

    def __init__(self, x):
        self.x = x


def linear_forward(batch, weight):
    """Mirror of Linear.forward: apply to a plain tensor, or in-place to batch.x."""
    if isinstance(batch, jax.Array):
        return linear_matmul(batch, weight)
    batch.x = linear_matmul(batch.x, weight)
    return batch


if __name__ == "__main__":
    key = jax.random.PRNGKey(0)
    k_x, k_w = jax.random.split(key)

    # Small shapes implied by the module (node features -> hidden features);
    # deliberately NOT tile-aligned to exercise the padding path.
    num_nodes, dim_in, dim_out = 200, 96, 160

    x = jax.random.normal(k_x, (num_nodes, dim_in), jnp.float32)
    # PyTorch nn.Linear default init: U(-1/sqrt(fan_in), 1/sqrt(fan_in))
    limit = 1.0 / (dim_in ** 0.5)
    weight = jax.random.uniform(k_w, (dim_out, dim_in), jnp.float32, -limit, limit)

    # Tensor path of Linear.forward
    out = linear_forward(x, weight)
    out = jax.block_until_ready(out)

    # Batch path of Linear.forward (batch.x = model(batch.x))
    batch = linear_forward(GraphBatch(x), weight)
    out_batch = jax.block_until_ready(batch.x)

    # Pure-JAX reference
    ref = jnp.dot(x, weight.T, precision=jax.lax.Precision.HIGHEST)

    assert out.shape == (num_nodes, dim_out)
    assert jnp.allclose(out, ref, atol=1e-4, rtol=1e-4)
    assert jnp.allclose(out_batch, ref, atol=1e-4, rtol=1e-4)

    print("KERNEL_OK")
</pallas_src>

<mosaic_0001>
module attributes {stable_mosaic.version = 11 : i64} {
  func.func @_linear_kernel(%arg0: i32, %arg1: i32, %arg2: i32, %arg3: memref<128x128xf32, #tpu.memory_space<vmem>>, %arg4: memref<128x128xf32, #tpu.memory_space<vmem>>, %arg5: memref<128x128xf32, #tpu.memory_space<vmem>>, %arg6: memref<128x128xf32, #tpu.memory_space<vmem>>) attributes {dimension_semantics = [#tpu.dimension_semantics<parallel>, #tpu.dimension_semantics<parallel>, #tpu.dimension_semantics<arbitrary>], iteration_bounds = array<i64: 2, 2, 1>, scalar_prefetch = 0 : i64, scratch_operands = 1 : i64, tpu.core_type = #tpu.core_type<tc>, window_params = [{transform_indices = @transform_0, window_bounds = array<i64: 128, 128>}, {transform_indices = @transform_1, window_bounds = array<i64: 128, 128>}, {transform_indices = @transform_2, window_bounds = array<i64: 128, 128>}]} {
    %c0_i32 = arith.constant 0 : i32
    %0 = arith.cmpi eq, %arg2, %c0_i32 : i32
    %1 = arith.extui %0 : i1 to i32
    %c0_i32_0 = arith.constant 0 : i32
    %2 = arith.cmpi ne, %1, %c0_i32_0 : i32
    scf.if %2 {
      %cst_10 = arith.constant 0.000000e+00 : f32
      %12 = vector.broadcast %cst_10 : f32 to vector<128x128xf32>
      %c0_11 = arith.constant 0 : index
      %c0_12 = arith.constant 0 : index
      %13 = vector.load %arg6[%c0_11, %c0_12] : memref<128x128xf32, #tpu.memory_space<vmem>>, vector<128x128xf32>
      tpu.vector_store %arg6[%c0_11, %c0_12], %12 {strides = array<i32>} : memref<128x128xf32, #tpu.memory_space<vmem>>, vector<128x128xf32>,
    } else {
    }
    %c0 = arith.constant 0 : index
    %c0_1 = arith.constant 0 : index
    %3 = vector.load %arg6[%c0, %c0_1] : memref<128x128xf32, #tpu.memory_space<vmem>>, vector<128x128xf32>
    %c0_2 = arith.constant 0 : index
    %c0_3 = arith.constant 0 : index
    %4 = vector.load %arg3[%c0_2, %c0_3] : memref<128x128xf32, #tpu.memory_space<vmem>>, vector<128x128xf32>
    %c0_4 = arith.constant 0 : index
    %c0_5 = arith.constant 0 : index
    %5 = vector.load %arg4[%c0_4, %c0_5] : memref<128x128xf32, #tpu.memory_space<vmem>>, vector<128x128xf32>
    %cst = arith.constant dense<0.000000e+00> : vector<128x128xf32>
    %6 = tpu.matmul %4, %5, %cst {dimension_numbers = #tpu.dot_dimension_numbers<[1], [0], [0], [1], [0, 0, 1, 1], [], []>} : vector<128x128xf32>, vector<128x128xf32>, vector<128x128xf32> -> vector<128x128xf32>
    %7 = arith.addf %3, %6 : vector<128x128xf32>
    %c0_6 = arith.constant 0 : index
    %c0_7 = arith.constant 0 : index
    %8 = vector.load %arg6[%c0_6, %c0_7] : memref<128x128xf32, #tpu.memory_space<vmem>>, vector<128x128xf32>
    tpu.vector_store %arg6[%c0_6, %c0_7], %7 {strides = array<i32>} : memref<128x128xf32, #tpu.memory_space<vmem>>, vector<128x128xf32>,
    %c0_i32_8 = arith.constant 0 : i32
    %9 = arith.cmpi eq, %arg2, %c0_i32_8 : i32
    %10 = arith.extui %9 : i1 to i32
    %c0_i32_9 = arith.constant 0 : i32
    %11 = arith.cmpi ne, %10, %c0_i32_9 : i32
    scf.if %11 {
      %c0_10 = arith.constant 0 : index
      %c0_11 = arith.constant 0 : index
      %12 = vector.load %arg6[%c0_10, %c0_11] : memref<128x128xf32, #tpu.memory_space<vmem>>, vector<128x128xf32>
      %c0_12 = arith.constant 0 : index
      %c0_13 = arith.constant 0 : index
      %13 = vector.load %arg5[%c0_12, %c0_13] : memref<128x128xf32, #tpu.memory_space<vmem>>, vector<128x128xf32>
      tpu.vector_store %arg5[%c0_12, %c0_13], %12 {strides = array<i32>} : memref<128x128xf32, #tpu.memory_space<vmem>>, vector<128x128xf32>,
    } else {
    }
    return
  }
  func.func @transform_0(%arg0: i32, %arg1: i32, %arg2: i32) -> (i32, i32) {
    %c0_i32 = arith.constant 0 : i32
    return %arg0, %arg2 : i32, i32
  }
  func.func @transform_1(%arg0: i32, %arg1: i32, %arg2: i32) -> (i32, i32) {
    %c0_i32 = arith.constant 0 : i32
    return %arg2, %arg1 : i32, i32
  }
  func.func @transform_2(%arg0: i32, %arg1: i32, %arg2: i32) -> (i32, i32) {
    %c0_i32 = arith.constant 0 : i32
    return %arg0, %arg1 : i32, i32
  }
}

</mosaic_0001>

<llo_original>
// kernel: linear_matmul.1
$region0: #{linear_matmul.1}
  #allocation0 [shape = 'u32[]', space=smem, size = 0x4, offset = 0x4, fixed_abs, tag = 'smem constant byte address 0x4 - core index']
  #allocation1 [shape = 'u32[72,128]{1,0:T(1,128)}', space=vmem, size = 0x9000, scoped, tag = 'internal scratch']
  #allocation2 [shape = 'f32[128,128]{1,0:T(8,128)}', space=vmem, size = 0x10000, scoped, tag = 'scratch operand']
  %s0 = inlined_call_operand.vmem [shape: f32[256,128], index: 0, kind: input, shape index: {}]
  %s1 = inlined_call_operand.vmem [shape: f32[128,256], index: 1, kind: input, shape index: {}]
  %s2 = inlined_call_operand.vmem [shape: f32[256,256], index: 2, kind: output, shape index: {}]
  %s3 = sld [smem:[#allocation0]]
  $region121: #{linear_matmul.1} parent=0
    _
  %s5 = ssub.s32 1, %s3
  %s6 = scalar_select 0, %s5, %s3
  $region1: #{linear_matmul.1} parent=0
    #allocation3 [shape = 'u8[131072]{0}', space=vmem, size = 0x20000, scoped, tag = 'input window, operand 1']
    #allocation4 [shape = 'u8[131072]{0}', space=vmem, size = 0x20000, scoped, tag = 'output window, operand 0']
    loop: start=0, step=1, limit=6
    $region2: #{linear_matmul.1} parent=1 // loop_pre_header
      _
    $region3: #{linear_matmul.1} parent=1 // loop_header
      %s8 = sphi 0, %s12
      %p9 = scmp.ge.s32.totalorder %s8, 6
      %s15 = sphi 0, %s34
      %s16 = sphi 0, %s30
      %s17 = sphi 0, %s26
      %s18 = sphi 0, %s15
      %s19 = sphi 0, %s16
      %s20 = sphi 0, %s17
      %s21 = sphi 0, %s18
      %s22 = sphi 0, %s19
      %s23 = sphi 0, %s20
      %s39 = sphi 0, %s41
      %s42 = sphi 0, %s39
      %s43 = sphi 0, %s42
      %s59 = sphi 0, %s43
      %s67 = sphi 0, %s69
      %s70 = sphi 0, %s67
      %s71 = sphi 0, %s70
      %s87 = sphi 0, %s71
      %s95 = sphi 0, %s97
      %s98 = sphi 0, %s95
      %s99 = sphi 0, %s98
      %s115 = sphi 0, %s99
    $region4: #{linear_matmul.1} parent=1 // loop_header_branch
      %11 = sbr.rel (%p9) target = $region8
    $region5: #{linear_matmul.1} parent=1 // loop_body
      %s13 = ssub.s32 %s8, 1
      %s14 = ssub.s32 %s8, 2
      %s24 = sadd.s32 1, %s17
      %p25 = scmp.ge.s32.totalorder %s24, 1
      %s26 = scalar_select %p25, 0, %s24
      %s27 = sadd.s32 1, %s16
      %s28 = scalar_select %p25, %s27, %s16
      %p29 = scmp.ge.s32.totalorder %s28, 2
      %s30 = scalar_select %p29, 0, %s28
      %s31 = sadd.s32 1, %s15
      %s32 = scalar_select %p29, %s31, %s15
      %p33 = scmp.ge.s32.totalorder %s32, 2
      %s34 = scalar_select %p33, 0, %s32
      %s35 = ssub.s32 %s15, %s34
      %s36 = ssub.s32 %s17, %s26
      %s37 = sor.u32 %s35, %s36
      %p38 = scmp.eq.s32.totalorder %s37, 0
      %s40 = sadd.s32 %s39, 1
      %s41 = scalar_select %p38, %s39, %s40
      %p44 = pneg %p38
      %p45 = scmp.eq.s32.totalorder %s8, 3
      %p46 = por %p44, %p45
      %p47 = scmp.ne.s32.totalorder %s39, %s42
      %p48 = scmp.eq.s32.totalorder %s8, 0
      %p49 = por %p47, %p48
      %p50 = scmp.ne.s32.totalorder %s39, %s42
      %p51 = scmp.eq.s32.totalorder %s13, 3
      %p52 = por %p50, %p51
      %p53 = scmp.ne.s32.totalorder %s42, %s43
      %p54 = scmp.eq.s32.totalorder %s13, 0
      %p55 = por %p53, %p54
      %p56 = scmp.ne.s32.totalorder %s42, %s43
      %p57 = scmp.eq.s32.totalorder %s14, 3
      %p58 = por %p56, %p57
      %p60 = scmp.ne.s32.totalorder %s43, %s59
      %p61 = scmp.eq.s32.totalorder %s14, 0
      %p62 = por %p60, %p61
      %s63 = ssub.s32 %s17, %s26
      %s64 = ssub.s32 %s16, %s30
      %s65 = sor.u32 %s63, %s64
      %p66 = scmp.eq.s32.totalorder %s65, 0
      %s68 = sadd.s32 %s67, 1
      %s69 = scalar_select %p66, %s67, %s68
      %p72 = pneg %p66
      %p73 = scmp.eq.s32.totalorder %s8, 3
      %p74 = por %p72, %p73
      %p75 = scmp.ne.s32.totalorder %s67, %s70
      %p76 = scmp.eq.s32.totalorder %s8, 0
      %p77 = por %p75, %p76
      %p78 = scmp.ne.s32.totalorder %s67, %s70
      %p79 = scmp.eq.s32.totalorder %s13, 3
      %p80 = por %p78, %p79
      %p81 = scmp.ne.s32.totalorder %s70, %s71
      %p82 = scmp.eq.s32.totalorder %s13, 0
      %p83 = por %p81, %p82
      %p84 = scmp.ne.s32.totalorder %s70, %s71
      %p85 = scmp.eq.s32.totalorder %s14, 3
      %p86 = por %p84, %p85
      %p88 = scmp.ne.s32.totalorder %s71, %s87
      %p89 = scmp.eq.s32.totalorder %s14, 0
      %p90 = por %p88, %p89
      %s91 = ssub.s32 %s15, %s34
      %s92 = ssub.s32 %s16, %s30
      %s93 = sor.u32 %s91, %s92
      %p94 = scmp.eq.s32.totalorder %s93, 0
      %s96 = sadd.s32 %s95, 1
      %s97 = scalar_select %p94, %s95, %s96
      %p100 = pneg %p94
      %p101 = scmp.eq.s32.totalorder %s8, 3
      %p102 = por %p100, %p101
      %p103 = scmp.ne.s32.totalorder %s95, %s98
      %p104 = scmp.eq.s32.totalorder %s8, 0
      %p105 = por %p103, %p104
      %p106 = scmp.ne.s32.totalorder %s95, %s98
      %p107 = scmp.eq.s32.totalorder %s13, 3
      %p108 = por %p106, %p107
      %p109 = scmp.ne.s32.totalorder %s98, %s99
      %p110 = scmp.eq.s32.totalorder %s13, 0
      %p111 = por %p109, %p110
      %p112 = scmp.ne.s32.totalorder %s98, %s99
      %p113 = scmp.eq.s32.totalorder %s14, 3
      %p114 = por %p112, %p113
      %p116 = scmp.ne.s32.totalorder %s99, %s115
      %p117 = scmp.eq.s32.totalorder %s14, 0
      %p118 = por %p116, %p117
      %p119 = scmp.le.s32.totalorder 1, %s8
      %p120 = scmp.lt.s32.totalorder %s8, 5
      %p121 = pnand %p119, %p120
      %p122 = pneg %p121
      // Predicated region
      $region9: #{linear_matmul.1} parent=5 // pred_check
        _
      $region10: #{linear_matmul.1} parent=5 // pred_check_branch
        %124 = sbr.rel (%p121) target = $region12
      $region11: #{linear_matmul.1} parent=5 // pred_region
        %s125 = ssub.s32 %s8, 1
      $region12: #{linear_matmul.1} parent=5 // pred_fallthru
        _
      %p126 = scmp.lt.s32.totalorder %s8, 4
      // Predicated region
      $region13: #{linear_matmul.1} parent=5 // pred_check
        %p127 = pneg %p126
      $region14: #{linear_matmul.1} parent=5 // pred_check_branch
        %129 = sbr.rel (%p127) target = $region16
      $region15: #{linear_matmul.1} parent=5 // pred_region
        // Predicated region
        $region17: #{linear_matmul.1} parent=15 // pred_check
          %p130 = pneg %p49
        $region18: #{linear_matmul.1} parent=15 // pred_check_branch
          %132 = sbr.rel (%p130) target = $region20
        $region19: #{linear_matmul.1} parent=15 // pred_region
          %s133 = smul.u32 16, %s15
          %p134 = scmp.lt.s32.totalorder %s133, 31
          %s135 = scalar_select %p134, %s133, 31
          %p136 = scmp.lt.s32.totalorder %s17, 0
          %s137 = scalar_select %p136, %s17, 0
          %s138 = sadd.s32 %s137, %s135
          %s139 = smul.addr %s138, 8
          %s140 = scalar_lea.vmem %s0, %s139
          %s141 = smul.u32 16, %s15
        $region20: #{linear_matmul.1} parent=15 // pred_fallthru
          _
        // Predicated region
        $region21: #{linear_matmul.1} parent=15 // pred_check
          %p142 = pneg %p77
        $region22: #{linear_matmul.1} parent=15 // pred_check_branch
          %144 = sbr.rel (%p142) target = $region24
        $region23: #{linear_matmul.1} parent=15 // pred_region
          %s145 = sand.u32 %s67, 1
          %s146 = sand.u32 %s67, 1
          %s147 = smul.addr %s146, 128
          %s148 = scalar_lea.vmem [#allocation3], %s147
          %s149 = smul.u32 16, %s17
          %s150 = smul.addr %s149, 2
          %s151 = sadd.s32 %s16, %s150
          %s152 = smul.addr %s151, 8
          %s153 = scalar_lea.vmem %s1, %s152
          // Predicated region
          $region25: #{linear_matmul.1} parent=23 // pred_check
            _
          $region26: #{linear_matmul.1} parent=23 // pred_check_branch
            %155 = sbr.rel (0) target = $region28
          $region27: #{linear_matmul.1} parent=23 // pred_region
            // Predicated region
            $region29: #{linear_matmul.1} parent=27 // pred_check
              _
            $region30: #{linear_matmul.1} parent=27 // pred_check_branch
              %157 = sbr.rel (0) target = $region32
            $region31: #{linear_matmul.1} parent=27 // pred_region
              // Predicated region
              $region44: #{linear_matmul.1} parent=31 // pred_check
                _
              $region45: #{linear_matmul.1} parent=31 // pred_check_branch
                %203 = sbr.rel (0) target = $region47
              $region46: #{linear_matmul.1} parent=31 // pred_region
                loop: start=0, step=1, limit=1
                $region48: #{linear_matmul.1} parent=46 // loop_pre_header
                  _
                $region49: #{linear_matmul.1} parent=46 // loop_header
                  %s205 = sphi 0, %s209
                  %p206 = scmp.ge.s32.totalorder %s205, 1
                  %s210 = sphi %s153, %s153
                  %s211 = sphi %s148, %s148
                $region50: #{linear_matmul.1} parent=46 // loop_header_branch
                  %208 = sbr.rel (%p206) target = $region54
                $region51: #{linear_matmul.1} parent=46 // loop_body
                  %v212 = vld [vmem:[%s210] sm:$0xff]
                  %213 = vst [vmem:[%s211] sm:$0xff] %v212
                  %v214 = vld [vmem:[%s210 + $0x10] sm:$0xff]
                  %215 = vst [vmem:[%s211 + $0x8] sm:$0xff] %v214
                  %v216 = vld [vmem:[%s210 + $0x20] sm:$0xff]
                  %217 = vst [vmem:[%s211 + $0x10] sm:$0xff] %v216
                  %v218 = vld [vmem:[%s210 + $0x30] sm:$0xff]
                  %219 = vst [vmem:[%s211 + $0x18] sm:$0xff] %v218
                  %v220 = vld [vmem:[%s210 + $0x40] sm:$0xff]
                  %221 = vst [vmem:[%s211 + $0x20] sm:$0xff] %v220
                  %v222 = vld [vmem:[%s210 + $0x50] sm:$0xff]
                  %223 = vst [vmem:[%s211 + $0x28] sm:$0xff] %v222
                  %v224 = vld [vmem:[%s210 + $0x60] sm:$0xff]
                  %225 = vst [vmem:[%s211 + $0x30] sm:$0xff] %v224
                  %v226 = vld [vmem:[%s210 + $0x70] sm:$0xff]
                  %227 = vst [vmem:[%s211 + $0x38] sm:$0xff] %v226
                  %v228 = vld [vmem:[%s210 + $0x80] sm:$0xff]
                  %229 = vst [vmem:[%s211 + $0x40] sm:$0xff] %v228
                  %v230 = vld [vmem:[%s210 + $0x90] sm:$0xff]
                  %231 = vst [vmem:[%s211 + $0x48] sm:$0xff] %v230
                  %v232 = vld [vmem:[%s210 + $0xa0] sm:$0xff]
                  %233 = vst [vmem:[%s211 + $0x50] sm:$0xff] %v232
                  %v234 = vld [vmem:[%s210 + $0xb0] sm:$0xff]
                  %235 = vst [vmem:[%s211 + $0x58] sm:$0xff] %v234
                  %v236 = vld [vmem:[%s210 + $0xc0] sm:$0xff]
                  %237 = vst [vmem:[%s211 + $0x60] sm:$0xff] %v236
                  %v238 = vld [vmem:[%s210 + $0xd0] sm:$0xff]
                  %239 = vst [vmem:[%s211 + $0x68] sm:$0xff] %v238
                  %v240 = vld [vmem:[%s210 + $0xe0] sm:$0xff]
                  %241 = vst [vmem:[%s211 + $0x70] sm:$0xff] %v240
                  %v242 = vld [vmem:[%s210 + $0xf0] sm:$0xff]
                  %243 = vst [vmem:[%s211 + $0x78] sm:$0xff] %v242
                $region52: #{linear_matmul.1} parent=46 // loop_footer
                  %s209 = sadd.s32 1, %s205
                $region53: #{linear_matmul.1} parent=46 // loop_footer_branch
                  %204 = sbr.rel target = $region49
                $region54: #{linear_matmul.1} parent=46 // loop_exit
                  _
              $region47: #{linear_matmul.1} parent=31 // pred_fallthru
                _
              // Predicated region
              $region55: #{linear_matmul.1} parent=31 // pred_check
                _
              $region56: #{linear_matmul.1} parent=31 // pred_check_branch
                %245 = sbr.rel target = $region58
              $region57: #{linear_matmul.1} parent=31 // pred_region
                _
              $region58: #{linear_matmul.1} parent=31 // pred_fallthru
                _
            $region32: #{linear_matmul.1} parent=27 // pred_fallthru
              _
            // Predicated region
            $region33: #{linear_matmul.1} parent=27 // pred_check
              _
            $region34: #{linear_matmul.1} parent=27 // pred_check_branch
              %159 = sbr.rel target = $region36
            $region35: #{linear_matmul.1} parent=27 // pred_region
              %s161 = ssub.s32 256, 1
              loop: start=0, step=1, limit=1
              $region37: #{linear_matmul.1} parent=35 // loop_pre_header
                _
              $region38: #{linear_matmul.1} parent=35 // loop_header
                %s163 = sphi 0, %s167
                %p164 = scmp.ge.s32.totalorder %s163, 1
                %s168 = sphi %s153, %s153
                %s169 = sphi %s148, %s148
              $region39: #{linear_matmul.1} parent=35 // loop_header_branch
                %166 = sbr.rel (%p164) target = $region43
              $region40: #{linear_matmul.1} parent=35 // loop_body
                %v170 = vld [vmem:[%s168] sm:%s161]
                %171 = vst [vmem:[%s169] sm:%s161] %v170
                %v172 = vld [vmem:[%s168 + $0x10] sm:%s161]
                %173 = vst [vmem:[%s169 + $0x8] sm:%s161] %v172
                %v174 = vld [vmem:[%s168 + $0x20] sm:%s161]
                %175 = vst [vmem:[%s169 + $0x10] sm:%s161] %v174
                %v176 = vld [vmem:[%s168 + $0x30] sm:%s161]
                %177 = vst [vmem:[%s169 + $0x18] sm:%s161] %v176
                %v178 = vld [vmem:[%s168 + $0x40] sm:%s161]
                %179 = vst [vmem:[%s169 + $0x20] sm:%s161] %v178
                %v180 = vld [vmem:[%s168 + $0x50] sm:%s161]
                %181 = vst [vmem:[%s169 + $0x28] sm:%s161] %v180
                %v182 = vld [vmem:[%s168 + $0x60] sm:%s161]
                %183 = vst [vmem:[%s169 + $0x30] sm:%s161] %v182
                %v184 = vld [vmem:[%s168 + $0x70] sm:%s161]
                %185 = vst [vmem:[%s169 + $0x38] sm:%s161] %v184
                %v186 = vld [vmem:[%s168 + $0x80] sm:%s161]
                %187 = vst [vmem:[%s169 + $0x40] sm:%s161] %v186
                %v188 = vld [vmem:[%s168 + $0x90] sm:%s161]
                %189 = vst [vmem:[%s169 + $0x48] sm:%s161] %v188
                %v190 = vld [vmem:[%s168 + $0xa0] sm:%s161]
                %191 = vst [vmem:[%s169 + $0x50] sm:%s161] %v190
                %v192 = vld [vmem:[%s168 + $0xb0] sm:%s161]
                %193 = vst [vmem:[%s169 + $0x58] sm:%s161] %v192
                %v194 = vld [vmem:[%s168 + $0xc0] sm:%s161]
                %195 = vst [vmem:[%s169 + $0x60] sm:%s161] %v194
                %v196 = vld [vmem:[%s168 + $0xd0] sm:%s161]
                %197 = vst [vmem:[%s169 + $0x68] sm:%s161] %v196
                %v198 = vld [vmem:[%s168 + $0xe0] sm:%s161]
                %199 = vst [vmem:[%s169 + $0x70] sm:%s161] %v198
                %v200 = vld [vmem:[%s168 + $0xf0] sm:%s161]
                %201 = vst [vmem:[%s169 + $0x78] sm:%s161] %v200
              $region41: #{linear_matmul.1} parent=35 // loop_footer
                %s167 = sadd.s32 1, %s163
              $region42: #{linear_matmul.1} parent=35 // loop_footer_branch
                %162 = sbr.rel target = $region38
              $region43: #{linear_matmul.1} parent=35 // loop_exit
                _
            $region36: #{linear_matmul.1} parent=27 // pred_fallthru
              _
          $region28: #{linear_matmul.1} parent=23 // pred_fallthru
            _
          %246 = vnop
        $region24: #{linear_matmul.1} parent=15 // pred_fallthru
          _
      $region16: #{linear_matmul.1} parent=5 // pred_fallthru
        _
      %p247 = scmp.le.s32.totalorder 1, %s8
      %p248 = scmp.lt.s32.totalorder %s8, 5
      %p249 = pnand %p247, %p248
      %p250 = pneg %p249
      // Predicated region
      $region59: #{linear_matmul.1} parent=5 // pred_check
        _
      $region60: #{linear_matmul.1} parent=5 // pred_check_branch
        %252 = sbr.rel (%p249) target = $region62
      $region61: #{linear_matmul.1} parent=5 // pred_region
        %s253 = ssub.s32 %s8, 1
        %s254 = sand.u32 %s70, 1
        %s255 = sand.u32 %s70, 1
        %s256 = smul.addr %s255, 128
        %s257 = scalar_lea.vmem [#allocation3], %s256
        // Predicated region
        $region63: #{linear_matmul.1} parent=61 // pred_check
          %p258 = pneg %p83
        $region64: #{linear_matmul.1} parent=61 // pred_check_branch
          %260 = sbr.rel (%p258) target = $region66
        $region65: #{linear_matmul.1} parent=61 // pred_region
          _
        $region66: #{linear_matmul.1} parent=61 // pred_fallthru
          _
        %s261 = smul.u32 16, %s18
        %p262 = scmp.lt.s32.totalorder %s261, 31
        %s263 = scalar_select %p262, %s261, 31
        %p264 = scmp.lt.s32.totalorder %s20, 0
        %s265 = scalar_select %p264, %s20, 0
        %s266 = sadd.s32 %s265, %s263
        %s267 = smul.addr %s266, 8
        %s268 = scalar_lea.vmem %s0, %s267
        %p269 = pneg %p55
        %p270 = pneg %p52
        %s271 = sand.u32 %s70, 1
        %s272 = sand.u32 %s70, 1
        %s273 = smul.addr %s272, 128
        %s274 = scalar_lea.vmem [#allocation3], %s273
        %p275 = pneg %p83
        %p276 = pneg %p80
        %p277 = pneg %p111
        %p278 = pneg %p108
        %s279 = sand.u32 %s98, 1
        %s280 = sand.u32 %s98, 1
        %s281 = smul.addr %s280, 128
        %s282 = scalar_lea.vmem [#allocation4], %s281
        %s283 = smul.u32 16, %s18
        %p284 = scmp.lt.s32.totalorder %s283, 31
        %s285 = scalar_select %p284, %s283, 31
        %p286 = scmp.lt.s32.totalorder %s20, 0
        %s287 = scalar_select %p286, %s20, 0
        %s288 = sadd.s32 %s287, %s285
        %s289 = smul.addr %s288, 8
        %s290 = scalar_lea.vmem %s0, %s289
        %s291 = smul.u32 16, %s18
        %s292 = smul.u32 16, %s20
        %s293 = smul.u32 16, %s18
        %p294 = scmp.eq.s32.totalorder %s20, 0
        // Predicated region
        $region67: #{linear_matmul.1} parent=61 // pred_check
          %p295 = pneg %p294
        $region68: #{linear_matmul.1} parent=61 // pred_check_branch
          %297 = sbr.rel (%p295) target = $region70
        $region69: #{linear_matmul.1} parent=61 // pred_region
          %298 = vst [vmem:[#allocation2] sm:$0xff] 0.0
          %299 = vst [vmem:[#allocation2 + $0x8] sm:$0xff] 0.0
          %300 = vst [vmem:[#allocation2 + $0x10] sm:$0xff] 0.0
          %301 = vst [vmem:[#allocation2 + $0x18] sm:$0xff] 0.0
          %302 = vst [vmem:[#allocation2 + $0x20] sm:$0xff] 0.0
          %303 = vst [vmem:[#allocation2 + $0x28] sm:$0xff] 0.0
          %304 = vst [vmem:[#allocation2 + $0x30] sm:$0xff] 0.0
          %305 = vst [vmem:[#allocation2 + $0x38] sm:$0xff] 0.0
          %306 = vst [vmem:[#allocation2 + $0x40] sm:$0xff] 0.0
          %307 = vst [vmem:[#allocation2 + $0x48] sm:$0xff] 0.0
          %308 = vst [vmem:[#allocation2 + $0x50] sm:$0xff] 0.0
          %309 = vst [vmem:[#allocation2 + $0x58] sm:$0xff] 0.0
          %310 = vst [vmem:[#allocation2 + $0x60] sm:$0xff] 0.0
          %311 = vst [vmem:[#allocation2 + $0x68] sm:$0xff] 0.0
          %312 = vst [vmem:[#allocation2 + $0x70] sm:$0xff] 0.0
          %313 = vst [vmem:[#allocation2 + $0x78] sm:$0xff] 0.0
        $region70: #{linear_matmul.1} parent=61 // pred_fallthru
          _
        %v314 = vld [vmem:[#allocation2] sm:$0xff]
        %v315 = vld [vmem:[#allocation2 + $0x8] sm:$0xff]
        %v316 = vld [vmem:[#allocation2 + $0x10] sm:$0xff]
        %v317 = vld [vmem:[#allocation2 + $0x18] sm:$0xff]
        %v318 = vld [vmem:[#allocation2 + $0x20] sm:$0xff]
        %v319 = vld [vmem:[#allocation2 + $0x28] sm:$0xff]
        %v320 = vld [vmem:[#allocation2 + $0x30] sm:$0xff]
        %v321 = vld [vmem:[#allocation2 + $0x38] sm:$0xff]
        %v322 = vld [vmem:[#allocation2 + $0x40] sm:$0xff]
        %v323 = vld [vmem:[#allocation2 + $0x48] sm:$0xff]
        %v324 = vld [vmem:[#allocation2 + $0x50] sm:$0xff]
        %v325 = vld [vmem:[#allocation2 + $0x58] sm:$0xff]
        %v326 = vld [vmem:[#allocation2 + $0x60] sm:$0xff]
        %v327 = vld [vmem:[#allocation2 + $0x68] sm:$0xff]
        %v328 = vld [vmem:[#allocation2 + $0x70] sm:$0xff]
        %v329 = vld [vmem:[#allocation2 + $0x78] sm:$0xff]
        %v330 = vld [vmem:[%s290] sm:$0xff]
        %v331 = vld [vmem:[%s290 + $0x8] sm:$0xff]
        %v332 = vld [vmem:[%s290 + $0x10] sm:$0xff]
        %v333 = vld [vmem:[%s290 + $0x18] sm:$0xff]
        %v334 = vld [vmem:[%s290 + $0x20] sm:$0xff]
        %v335 = vld [vmem:[%s290 + $0x28] sm:$0xff]
        %v336 = vld [vmem:[%s290 + $0x30] sm:$0xff]
        %v337 = vld [vmem:[%s290 + $0x38] sm:$0xff]
        %v338 = vld [vmem:[%s290 + $0x40] sm:$0xff]
        %v339 = vld [vmem:[%s290 + $0x48] sm:$0xff]
        %v340 = vld [vmem:[%s290 + $0x50] sm:$0xff]
        %v341 = vld [vmem:[%s290 + $0x58] sm:$0xff]
        %v342 = vld [vmem:[%s290 + $0x60] sm:$0xff]
        %v343 = vld [vmem:[%s290 + $0x68] sm:$0xff]
        %v344 = vld [vmem:[%s290 + $0x70] sm:$0xff]
        %v345 = vld [vmem:[%s290 + $0x78] sm:$0xff]
        %v346 = vld [vmem:[%s257] sm:$0xff]
        %v347 = vld [vmem:[%s257 + $0x8] sm:$0xff]
        %v348 = vld [vmem:[%s257 + $0x10] sm:$0xff]
        %v349 = vld [vmem:[%s257 + $0x18] sm:$0xff]
        %v350 = vld [vmem:[%s257 + $0x20] sm:$0xff]
        %v351 = vld [vmem:[%s257 + $0x28] sm:$0xff]
        %v352 = vld [vmem:[%s257 + $0x30] sm:$0xff]
        %v353 = vld [vmem:[%s257 + $0x38] sm:$0xff]
        %v354 = vld [vmem:[%s257 + $0x40] sm:$0xff]
        %v355 = vld [vmem:[%s257 + $0x48] sm:$0xff]
        %v356 = vld [vmem:[%s257 + $0x50] sm:$0xff]
        %v357 = vld [vmem:[%s257 + $0x58] sm:$0xff]
        %v358 = vld [vmem:[%s257 + $0x60] sm:$0xff]
        %v359 = vld [vmem:[%s257 + $0x68] sm:$0xff]
        %v360 = vld [vmem:[%s257 + $0x70] sm:$0xff]
        %v361 = vld [vmem:[%s257 + $0x78] sm:$0xff]
        %362 = vmatpush.msra.mxu0 %v361
        %363 = vmatpush.msra.mxu0 %v360
        %364 = vmatpush.msra.mxu0 %v359
        %365 = vmatpush.msra.mxu0 %v358
        %366 = vmatpush.msra.mxu0 %v357
        %367 = vmatpush.msra.mxu0 %v356
        %368 = vmatpush.msra.mxu0 %v355
        %369 = vmatpush.msra.mxu0 %v354
        %370 = vmatpush.msra.mxu0 %v353
        %371 = vmatpush.msra.mxu0 %v352
        %372 = vmatpush.msra.mxu0 %v351
        %373 = vmatpush.msra.mxu0 %v350
        %374 = vmatpush.msra.mxu0 %v349
        %375 = vmatpush.msra.mxu0 %v348
        %376 = vmatpush.msra.mxu0 %v347
        %377 = vmatpush.msra.mxu0 %v346
        %378 = vmatmul.f32.gmra.mxu0 %v330
        %v379 = vpop.f32.mrf.mxu0
        %v380 = vadd.f32 0.0, %v379
        %381 = vmatmul.f32.gmra.mxu0 %v331
        %v382 = vpop.f32.mrf.mxu0
        %v383 = vadd.f32 0.0, %v382
        %384 = vmatmul.f32.gmra.mxu0 %v332
        %v385 = vpop.f32.mrf.mxu0
        %v386 = vadd.f32 0.0, %v385
        %387 = vmatmul.f32.gmra.mxu0 %v333
        %v388 = vpop.f32.mrf.mxu0
        %v389 = vadd.f32 0.0, %v388
        %390 = vmatmul.f32.gmra.mxu0 %v334
        %v391 = vpop.f32.mrf.mxu0
        %v392 = vadd.f32 0.0, %v391
        %393 = vmatmul.f32.gmra.mxu0 %v335
        %v394 = vpop.f32.mrf.mxu0
        %v395 = vadd.f32 0.0, %v394
        %396 = vmatmul.f32.gmra.mxu0 %v336
        %v397 = vpop.f32.mrf.mxu0
        %v398 = vadd.f32 0.0, %v397
        %399 = vmatmul.f32.gmra.mxu0 %v337
        %v400 = vpop.f32.mrf.mxu0
        %v401 = vadd.f32 0.0, %v400
        %402 = vmatmul.f32.gmra.mxu0 %v338
        %v403 = vpop.f32.mrf.mxu0
        %v404 = vadd.f32 0.0, %v403
        %405 = vmatmul.f32.gmra.mxu0 %v339
        %v406 = vpop.f32.mrf.mxu0
        %v407 = vadd.f32 0.0, %v406
        %408 = vmatmul.f32.gmra.mxu0 %v340
        %v409 = vpop.f32.mrf.mxu0
        %v410 = vadd.f32 0.0, %v409
        %411 = vmatmul.f32.gmra.mxu0 %v341
        %v412 = vpop.f32.mrf.mxu0
        %v413 = vadd.f32 0.0, %v412
        %414 = vmatmul.f32.gmra.mxu0 %v342
        %v415 = vpop.f32.mrf.mxu0
        %v416 = vadd.f32 0.0, %v415
        %417 = vmatmul.f32.gmra.mxu0 %v343
        %v418 = vpop.f32.mrf.mxu0
        %v419 = vadd.f32 0.0, %v418
        %420 = vmatmul.f32.gmra.mxu0 %v344
        %v421 = vpop.f32.mrf.mxu0
        %v422 = vadd.f32 0.0, %v421
        %423 = vmatmul.f32.gmra.mxu0 %v345
        %v424 = vpop.f32.mrf.mxu0
        %v425 = vadd.f32 0.0, %v424
        %426 = vdwg.mxu0
        %v427 = vadd.f32 %v314, %v380
        %v428 = vadd.f32 %v315, %v383
        %v429 = vadd.f32 %v316, %v386
        %v430 = vadd.f32 %v317, %v389
        %v431 = vadd.f32 %v318, %v392
        %v432 = vadd.f32 %v319, %v395
        %v433 = vadd.f32 %v320, %v398
        %v434 = vadd.f32 %v321, %v401
        %v435 = vadd.f32 %v322, %v404
        %v436 = vadd.f32 %v323, %v407
        %v437 = vadd.f32 %v324, %v410
        %v438 = vadd.f32 %v325, %v413
        %v439 = vadd.f32 %v326, %v416
        %v440 = vadd.f32 %v327, %v419
        %v441 = vadd.f32 %v328, %v422
        %v442 = vadd.f32 %v329, %v425
        %443 = vst [vmem:[#allocation2] sm:$0xff] %v427
        %444 = vst [vmem:[#allocation2 + $0x8] sm:$0xff] %v428
        %445 = vst [vmem:[#allocation2 + $0x10] sm:$0xff] %v429
        %446 = vst [vmem:[#allocation2 + $0x18] sm:$0xff] %v430
        %447 = vst [vmem:[#allocation2 + $0x20] sm:$0xff] %v431
        %448 = vst [vmem:[#allocation2 + $0x28] sm:$0xff] %v432
        %449 = vst [vmem:[#allocation2 + $0x30] sm:$0xff] %v433
        %450 = vst [vmem:[#allocation2 + $0x38] sm:$0xff] %v434
        %451 = vst [vmem:[#allocation2 + $0x40] sm:$0xff] %v435
        %452 = vst [vmem:[#allocation2 + $0x48] sm:$0xff] %v436
        %453 = vst [vmem:[#allocation2 + $0x50] sm:$0xff] %v437
        %454 = vst [vmem:[#allocation2 + $0x58] sm:$0xff] %v438
        %455 = vst [vmem:[#allocation2 + $0x60] sm:$0xff] %v439
        %456 = vst [vmem:[#allocation2 + $0x68] sm:$0xff] %v440
        %457 = vst [vmem:[#allocation2 + $0x70] sm:$0xff] %v441
        %458 = vst [vmem:[#allocation2 + $0x78] sm:$0xff] %v442
        // Predicated region
        $region71: #{linear_matmul.1} parent=61 // pred_check
          %p459 = pneg %p294
        $region72: #{linear_matmul.1} parent=61 // pred_check_branch
          %461 = sbr.rel (%p459) target = $region74
        $region73: #{linear_matmul.1} parent=61 // pred_region
          %v462 = vld [vmem:[#allocation2] sm:$0xff]
          %v463 = vld [vmem:[#allocation2 + $0x8] sm:$0xff]
          %v464 = vld [vmem:[#allocation2 + $0x10] sm:$0xff]
          %v465 = vld [vmem:[#allocation2 + $0x18] sm:$0xff]
          %v466 = vld [vmem:[#allocation2 + $0x20] sm:$0xff]
          %v467 = vld [vmem:[#allocation2 + $0x28] sm:$0xff]
          %v468 = vld [vmem:[#allocation2 + $0x30] sm:$0xff]
          %v469 = vld [vmem:[#allocation2 + $0x38] sm:$0xff]
          %v470 = vld [vmem:[#allocation2 + $0x40] sm:$0xff]
          %v471 = vld [vmem:[#allocation2 + $0x48] sm:$0xff]
          %v472 = vld [vmem:[#allocation2 + $0x50] sm:$0xff]
          %v473 = vld [vmem:[#allocation2 + $0x58] sm:$0xff]
          %v474 = vld [vmem:[#allocation2 + $0x60] sm:$0xff]
          %v475 = vld [vmem:[#allocation2 + $0x68] sm:$0xff]
          %v476 = vld [vmem:[#allocation2 + $0x70] sm:$0xff]
          %v477 = vld [vmem:[#allocation2 + $0x78] sm:$0xff]
          %478 = vst [vmem:[%s282] sm:$0xff] %v462
          %479 = vst [vmem:[%s282 + $0x8] sm:$0xff] %v463
          %480 = vst [vmem:[%s282 + $0x10] sm:$0xff] %v464
          %481 = vst [vmem:[%s282 + $0x18] sm:$0xff] %v465
          %482 = vst [vmem:[%s282 + $0x20] sm:$0xff] %v466
          %483 = vst [vmem:[%s282 + $0x28] sm:$0xff] %v467
          %484 = vst [vmem:[%s282 + $0x30] sm:$0xff] %v468
          %485 = vst [vmem:[%s282 + $0x38] sm:$0xff] %v469
          %486 = vst [vmem:[%s282 + $0x40] sm:$0xff] %v470
          %487 = vst [vmem:[%s282 + $0x48] sm:$0xff] %v471
          %488 = vst [vmem:[%s282 + $0x50] sm:$0xff] %v472
          %489 = vst [vmem:[%s282 + $0x58] sm:$0xff] %v473
          %490 = vst [vmem:[%s282 + $0x60] sm:$0xff] %v474
          %491 = vst [vmem:[%s282 + $0x68] sm:$0xff] %v475
          %492 = vst [vmem:[%s282 + $0x70] sm:$0xff] %v476
          %493 = vst [vmem:[%s282 + $0x78] sm:$0xff] %v477
        $region74: #{linear_matmul.1} parent=61 // pred_fallthru
          _
        %s494 = sand.u32 %s98, 1
        %s495 = sand.u32 %s98, 1
        %s496 = smul.addr %s495, 128
        %s497 = scalar_lea.vmem [#allocation4], %s496
        // Predicated region
        $region75: #{linear_matmul.1} parent=61 // pred_check
          %p498 = pneg %p108
        $region76: #{linear_matmul.1} parent=61 // pred_check_branch
          %500 = sbr.rel (%p498) target = $region78
        $region77: #{linear_matmul.1} parent=61 // pred_region
          %s501 = smul.u32 16, %s18
          %s502 = smul.addr %s501, 2
          %s503 = sadd.s32 %s19, %s502
          %s504 = smul.addr %s503, 8
          %s505 = scalar_lea.vmem %s2, %s504
          // Predicated region
          $region79: #{linear_matmul.1} parent=77 // pred_check
            _
          $region80: #{linear_matmul.1} parent=77 // pred_check_branch
            %507 = sbr.rel (0) target = $region82
          $region81: #{linear_matmul.1} parent=77 // pred_region
            // Predicated region
            $region83: #{linear_matmul.1} parent=81 // pred_check
              _
            $region84: #{linear_matmul.1} parent=81 // pred_check_branch
              %509 = sbr.rel (0) target = $region86
            $region85: #{linear_matmul.1} parent=81 // pred_region
              // Predicated region
              $region98: #{linear_matmul.1} parent=85 // pred_check
                _
              $region99: #{linear_matmul.1} parent=85 // pred_check_branch
                %555 = sbr.rel (0) target = $region101
              $region100: #{linear_matmul.1} parent=85 // pred_region
                loop: start=0, step=1, limit=1
                $region102: #{linear_matmul.1} parent=100 // loop_pre_header
                  _
                $region103: #{linear_matmul.1} parent=100 // loop_header
                  %s557 = sphi 0, %s561
                  %p558 = scmp.ge.s32.totalorder %s557, 1
                  %s562 = sphi %s497, %s497
                  %s563 = sphi %s505, %s505
                $region104: #{linear_matmul.1} parent=100 // loop_header_branch
                  %560 = sbr.rel (%p558) target = $region108
                $region105: #{linear_matmul.1} parent=100 // loop_body
                  %v564 = vld [vmem:[%s562] sm:$0xff]
                  %565 = vst [vmem:[%s563] sm:$0xff] %v564
                  %v566 = vld [vmem:[%s562 + $0x8] sm:$0xff]
                  %567 = vst [vmem:[%s563 + $0x10] sm:$0xff] %v566
                  %v568 = vld [vmem:[%s562 + $0x10] sm:$0xff]
                  %569 = vst [vmem:[%s563 + $0x20] sm:$0xff] %v568
                  %v570 = vld [vmem:[%s562 + $0x18] sm:$0xff]
                  %571 = vst [vmem:[%s563 + $0x30] sm:$0xff] %v570
                  %v572 = vld [vmem:[%s562 + $0x20] sm:$0xff]
                  %573 = vst [vmem:[%s563 + $0x40] sm:$0xff] %v572
                  %v574 = vld [vmem:[%s562 + $0x28] sm:$0xff]
                  %575 = vst [vmem:[%s563 + $0x50] sm:$0xff] %v574
                  %v576 = vld [vmem:[%s562 + $0x30] sm:$0xff]
                  %577 = vst [vmem:[%s563 + $0x60] sm:$0xff] %v576
                  %v578 = vld [vmem:[%s562 + $0x38] sm:$0xff]
                  %579 = vst [vmem:[%s563 + $0x70] sm:$0xff] %v578
                  %v580 = vld [vmem:[%s562 + $0x40] sm:$0xff]
                  %581 = vst [vmem:[%s563 + $0x80] sm:$0xff] %v580
                  %v582 = vld [vmem:[%s562 + $0x48] sm:$0xff]
                  %583 = vst [vmem:[%s563 + $0x90] sm:$0xff] %v582
                  %v584 = vld [vmem:[%s562 + $0x50] sm:$0xff]
                  %585 = vst [vmem:[%s563 + $0xa0] sm:$0xff] %v584
                  %v586 = vld [vmem:[%s562 + $0x58] sm:$0xff]
                  %587 = vst [vmem:[%s563 + $0xb0] sm:$0xff] %v586
                  %v588 = vld [vmem:[%s562 + $0x60] sm:$0xff]
                  %589 = vst [vmem:[%s563 + $0xc0] sm:$0xff] %v588
                  %v590 = vld [vmem:[%s562 + $0x68] sm:$0xff]
                  %591 = vst [vmem:[%s563 + $0xd0] sm:$0xff] %v590
                  %v592 = vld [vmem:[%s562 + $0x70] sm:$0xff]
                  %593 = vst [vmem:[%s563 + $0xe0] sm:$0xff] %v592
                  %v594 = vld [vmem:[%s562 + $0x78] sm:$0xff]
                  %595 = vst [vmem:[%s563 + $0xf0] sm:$0xff] %v594
                $region106: #{linear_matmul.1} parent=100 // loop_footer
                  %s561 = sadd.s32 1, %s557
                $region107: #{linear_matmul.1} parent=100 // loop_footer_branch
                  %556 = sbr.rel target = $region103
                $region108: #{linear_matmul.1} parent=100 // loop_exit
                  _
              $region101: #{linear_matmul.1} parent=85 // pred_fallthru
                _
              // Predicated region
              $region109: #{linear_matmul.1} parent=85 // pred_check
                _
              $region110: #{linear_matmul.1} parent=85 // pred_check_branch
                %597 = sbr.rel target = $region112
              $region111: #{linear_matmul.1} parent=85 // pred_region
                _
              $region112: #{linear_matmul.1} parent=85 // pred_fallthru
                _
            $region86: #{linear_matmul.1} parent=81 // pred_fallthru
              _
            // Predicated region
            $region87: #{linear_matmul.1} parent=81 // pred_check
              _
            $region88: #{linear_matmul.1} parent=81 // pred_check_branch
              %511 = sbr.rel target = $region90
            $region89: #{linear_matmul.1} parent=81 // pred_region
              %s513 = ssub.s32 256, 1
              loop: start=0, step=1, limit=1
              $region91: #{linear_matmul.1} parent=89 // loop_pre_header
                _
              $region92: #{linear_matmul.1} parent=89 // loop_header
                %s515 = sphi 0, %s519
                %p516 = scmp.ge.s32.totalorder %s515, 1
                %s520 = sphi %s497, %s497
                %s521 = sphi %s505, %s505
              $region93: #{linear_matmul.1} parent=89 // loop_header_branch
                %518 = sbr.rel (%p516) target = $region97
              $region94: #{linear_matmul.1} parent=89 // loop_body
                %v522 = vld [vmem:[%s520] sm:%s513]
                %523 = vst [vmem:[%s521] sm:%s513] %v522
                %v524 = vld [vmem:[%s520 + $0x8] sm:%s513]
                %525 = vst [vmem:[%s521 + $0x10] sm:%s513] %v524
                %v526 = vld [vmem:[%s520 + $0x10] sm:%s513]
                %527 = vst [vmem:[%s521 + $0x20] sm:%s513] %v526
                %v528 = vld [vmem:[%s520 + $0x18] sm:%s513]
                %529 = vst [vmem:[%s521 + $0x30] sm:%s513] %v528
                %v530 = vld [vmem:[%s520 + $0x20] sm:%s513]
                %531 = vst [vmem:[%s521 + $0x40] sm:%s513] %v530
                %v532 = vld [vmem:[%s520 + $0x28] sm:%s513]
                %533 = vst [vmem:[%s521 + $0x50] sm:%s513] %v532
                %v534 = vld [vmem:[%s520 + $0x30] sm:%s513]
                %535 = vst [vmem:[%s521 + $0x60] sm:%s513] %v534
                %v536 = vld [vmem:[%s520 + $0x38] sm:%s513]
                %537 = vst [vmem:[%s521 + $0x70] sm:%s513] %v536
                %v538 = vld [vmem:[%s520 + $0x40] sm:%s513]
                %539 = vst [vmem:[%s521 + $0x80] sm:%s513] %v538
                %v540 = vld [vmem:[%s520 + $0x48] sm:%s513]
                %541 = vst [vmem:[%s521 + $0x90] sm:%s513] %v540
                %v542 = vld [vmem:[%s520 + $0x50] sm:%s513]
                %543 = vst [vmem:[%s521 + $0xa0] sm:%s513] %v542
                %v544 = vld [vmem:[%s520 + $0x58] sm:%s513]
                %545 = vst [vmem:[%s521 + $0xb0] sm:%s513] %v544
                %v546 = vld [vmem:[%s520 + $0x60] sm:%s513]
                %547 = vst [vmem:[%s521 + $0xc0] sm:%s513] %v546
                %v548 = vld [vmem:[%s520 + $0x68] sm:%s513]
                %549 = vst [vmem:[%s521 + $0xd0] sm:%s513] %v548
                %v550 = vld [vmem:[%s520 + $0x70] sm:%s513]
                %551 = vst [vmem:[%s521 + $0xe0] sm:%s513] %v550
                %v552 = vld [vmem:[%s520 + $0x78] sm:%s513]
                %553 = vst [vmem:[%s521 + $0xf0] sm:%s513] %v552
              $region95: #{linear_matmul.1} parent=89 // loop_footer
                %s519 = sadd.s32 1, %s515
              $region96: #{linear_matmul.1} parent=89 // loop_footer_branch
                %514 = sbr.rel target = $region92
              $region97: #{linear_matmul.1} parent=89 // loop_exit
                _
            $region90: #{linear_matmul.1} parent=81 // pred_fallthru
              _
          $region82: #{linear_matmul.1} parent=77 // pred_fallthru
            _
          %598 = vnop
        $region78: #{linear_matmul.1} parent=61 // pred_fallthru
          _
      $region62: #{linear_matmul.1} parent=5 // pred_fallthru
        _
      %p599 = scmp.le.s32.totalorder 2, %s8
      // Predicated region
      $region113: #{linear_matmul.1} parent=5 // pred_check
        %p600 = pneg %p599
      $region114: #{linear_matmul.1} parent=5 // pred_check_branch
        %602 = sbr.rel (%p600) target = $region116
      $region115: #{linear_matmul.1} parent=5 // pred_region
        %s603 = ssub.s32 %s8, 2
        // Predicated region
        $region117: #{linear_matmul.1} parent=115 // pred_check
          %p604 = pneg %p114
        $region118: #{linear_matmul.1} parent=115 // pred_check_branch
          %606 = sbr.rel (%p604) target = $region120
        $region119: #{linear_matmul.1} parent=115 // pred_region
          %s607 = sand.u32 %s99, 1
          %s608 = sand.u32 %s99, 1
          %s609 = smul.addr %s608, 128
          %s610 = scalar_lea.vmem [#allocation4], %s609
        $region120: #{linear_matmul.1} parent=115 // pred_fallthru
          _
      $region116: #{linear_matmul.1} parent=5 // pred_fallthru
        _
    $region6: #{linear_matmul.1} parent=1 // loop_footer
      %s12 = sadd.s32 1, %s8
    $region7: #{linear_matmul.1} parent=1 // loop_footer_branch
      %7 = sbr.rel target = $region3
    $region8: #{linear_matmul.1} parent=1 // loop_exit
      _

</llo_original>
